<compile_context>
chip_gen: v5e
topology: v5e:2x2
jax: 0.10.0
libtpu: 0.0.40
codegen_flags: <defaults>
</compile_context>

<pallas_src>
import functools

import jax
import jax.numpy as jnp
from jax import lax
from jax.experimental import pallas as pl
from jax.experimental.pallas import tpu as pltpu

LANES = 128
_MIB = 1024 * 1024

_TPU_PARAMS = None


def _tpu_params():
    """Best-effort generation-aware scoped-VMEM budget and TensorCore count."""
    global _TPU_PARAMS
    if _TPU_PARAMS is None:
        vmem_bytes = 64 * _MIB            # conservative default (v7x per-TC)
        num_cores = 1
        try:
            info = pltpu.get_tpu_info()
            vmem_bytes = int(getattr(info, "vmem_capacity_bytes", vmem_bytes))
            for attr in ("num_tensorcores", "tensorcore_count",
                         "num_cores", "core_count"):
                v = getattr(info, attr, None)
                if isinstance(v, int) and v >= 1:
                    num_cores = v
                    break
        except Exception:
            pass
        # ~100 MiB scoped on 128 MiB parts (v5e/v6e), ~56 MiB on 64 MiB (v7x).
        vmem_limit = max(32 * _MIB, min(vmem_bytes - 8 * _MIB, 100 * _MIB))
        _TPU_PARAMS = (vmem_limit, min(num_cores, 2))
    return _TPU_PARAMS


def _pick_fused_block_rows(total_rows):
    """Largest row count that divides total_rows, is a multiple of 8 and is at
    most 2048 rows (1 MiB of f32).  Used to pipeline the fused path's output
    writeback with no ragged / OOB blocks.  None if no such block exists."""
    if total_rows % 8 != 0:
        return None
    if total_rows <= 2048:
        return total_rows
    for cand in (2048, 1792, 1536, 1280, 1024, 896, 768, 640, 512, 448, 384,
                 320, 256, 192, 128, 64, 32, 16, 8):
        if total_rows % cand == 0:
            return cand
    return None


# ---------------------------------------------------------------------------
# Fused single-read kernel (slab resident in VMEM): stats at step 0, then
# blockwise normalize so output DMA overlaps compute.
# ---------------------------------------------------------------------------
def _fused_kernel(x_ref, o_ref, mean_sc, inv_sc, *, n_valid, fb_rows, nb, fold,
                  shift):
    i = pl.program_id(0)

    @pl.when(i == 0)
    def _():
        if shift:
            c = x_ref[0:1, 0:1].astype(jnp.float32)        # (1,1) shift value
        else:
            c = jnp.zeros((1, 1), jnp.float32)

        if fold and nb > 1:
            def body(j, carry):
                ps, psq = carry
                start = pl.multiple_of(j * fb_rows, 8)
                xb = x_ref[pl.ds(start, fb_rows), :].astype(jnp.float32) - c
                xg = xb.reshape(fb_rows // 8, 8, LANES)
                return ps + jnp.sum(xg, axis=0), psq + jnp.sum(xg * xg, axis=0)

            zero = jnp.zeros((8, LANES), jnp.float32)
            ps, psq = lax.fori_loop(0, nb, body, (zero, zero))
            s = jnp.sum(ps, keepdims=True)                 # (1,1)
            sq = jnp.sum(psq, keepdims=True)               # (1,1)
        elif fold:
            xb = x_ref[...].astype(jnp.float32) - c
            xg = xb.reshape(fb_rows // 8, 8, LANES)
            s = jnp.sum(jnp.sum(xg, axis=0), keepdims=True)
            sq = jnp.sum(jnp.sum(xg * xg, axis=0), keepdims=True)
        else:
            xb = x_ref[...].astype(jnp.float32) - c
            s = jnp.sum(xb, keepdims=True)
            sq = jnp.sum(xb * xb, keepdims=True)

        n = jnp.float32(n_valid)
        denom = jnp.float32(max(n_valid - 1, 1))           # guard n == 1
        mean = c + s / n
        var = jnp.maximum((sq - s * s / n) / denom, 0.0)   # cancellation clamp
        mean_sc[...] = mean
        inv_sc[...] = lax.rsqrt(var)

    mean = mean_sc[...]                                    # (1,1)
    inv_std = inv_sc[...]                                  # (1,1)
    if nb == 1:
        xb = x_ref[...].astype(jnp.float32)
    else:
        start = pl.multiple_of(i * fb_rows, 8)
        xb = x_ref[pl.ds(start, fb_rows), :].astype(jnp.float32)
    o_ref[...] = ((xb - mean) * inv_std).astype(o_ref.dtype)


# ---------------------------------------------------------------------------
# Pass 1 (large tensors): per-core (8,128) partial sums of (x-c), (x-c)^2.
# Ragged-tail mask gated to the single partial block; duplicated clamped
# blocks (uneven core split) contribute nothing.
# ---------------------------------------------------------------------------
def _reduce_kernel(c_ref, x_ref, sum_ref, sq_ref, *, block_rows,
                   blocks_per_core, num_blocks, total_rows, core_split):
    c_idx = pl.program_id(0)
    i = pl.program_id(1)

    @pl.when(i == 0)
    def _():
        sum_ref[...] = jnp.zeros_like(sum_ref)
        sq_ref[...] = jnp.zeros_like(sq_ref)

    blk = c_idx * blocks_per_core + i
    last = num_blocks - 1
    tail_ragged = (num_blocks * block_rows) != total_rows        # static
    has_dups = (core_split * blocks_per_core) > num_blocks       # static
    shift = c_ref[...]                                           # (1,1)

    def accumulate(x):
        # Fold (block_rows, 128) down to one (8,128) vreg of partials with
        # pure VPU adds (no per-step XLU / scalar reduce).
        xg = x.reshape(block_rows // 8, 8, LANES)
        sum_ref[...] += jnp.sum(xg, axis=0)
        sq_ref[...] += jnp.sum(xg * xg, axis=0)

    if not tail_ragged and not has_dups:
        accumulate(x_ref[...].astype(jnp.float32) - shift)
    else:
        full_upper = last if tail_ragged else num_blocks

        @pl.when(blk < full_upper)
        def _():
            accumulate(x_ref[...].astype(jnp.float32) - shift)

        if tail_ragged:
            @pl.when(blk == last)
            def _():
                x = x_ref[...].astype(jnp.float32) - shift
                rows = last * block_rows + lax.broadcasted_iota(
                    jnp.int32, (block_rows, 1), 0)
                accumulate(jnp.where(rows < total_rows, x, 0.0))


# ---------------------------------------------------------------------------
# Pass 2 (large tensors): finalize mean / inv_std in-kernel at step 0 from the
# pass-1 partials, then a pure 1R+1W elementwise stream.
# ---------------------------------------------------------------------------
def _normalize_kernel(c_ref, ps_ref, psq_ref, x_ref, o_ref, mean_sc, inv_sc,
                      *, n_valid):
    @pl.when(pl.program_id(0) == 0)
    def _():
        c = c_ref[...]                                     # (1,1)
        s = jnp.sum(ps_ref[...], keepdims=True)            # (1,1)
        sq = jnp.sum(psq_ref[...], keepdims=True)          # (1,1)
        n = jnp.float32(n_valid)
        denom = jnp.float32(max(n_valid - 1, 1))
        mean = c + s / n
        var = jnp.maximum((sq - s * s / n) / denom, 0.0)
        mean_sc[...] = mean
        inv_sc[...] = lax.rsqrt(var)

    mean = mean_sc[...]
    inv_std = inv_sc[...]
    o_ref[...] = ((x_ref[...].astype(jnp.float32) - mean)
                  * inv_std).astype(o_ref.dtype)


@jax.jit
def _custom_normalize_impl(image):
    orig_shape = image.shape
    orig_dtype = image.dtype
    n_elems = image.size
    itemsize = jnp.dtype(orig_dtype).itemsize
    vmem_limit, num_cores = _tpu_params()

    flat = image.reshape(-1)
    rem = (-n_elems) % LANES
    if rem:
        # TODO(synk): a masked-tail manual DMA would avoid this full-copy pad
        # for huge tensors whose numel is not a multiple of 128 (rare for NCHW
        # image inputs).
        flat = jnp.pad(flat, (0, rem))
    total_rows = flat.size // LANES
    x2d = flat.reshape(total_rows, LANES)
    slab_bytes = total_rows * LANES * itemsize

    # With host-side zero padding we cannot use a nonzero shift (pad rows would
    # no longer contribute zero to the shifted sums).
    use_shift = rem == 0

    fb_rows = _pick_fused_block_rows(total_rows)
    nb = (total_rows // fb_rows) if fb_rows else 0
    fused_gridded_ok = (
        fb_rows is not None
        and slab_bytes <= int(vmem_limit * 0.6)
        and (nb <= 64 or fb_rows * LANES * itemsize >= 256 * 1024))
    fused_single_ok = slab_bytes <= min(4 * _MIB, vmem_limit // 8)

    if fused_gridded_ok or fused_single_ok:
        # ---- Fused path: 1 HBM read + 1 HBM write ---------------------------
        if fused_gridded_ok:
            fold = True
        else:
            fb_rows, nb = total_rows, 1
            fold = (total_rows % 8) == 0
        out2d = pl.pallas_call(
            functools.partial(_fused_kernel, n_valid=n_elems, fb_rows=fb_rows,
                              nb=nb, fold=fold, shift=use_shift),
            out_shape=jax.ShapeDtypeStruct(x2d.shape, orig_dtype),
            grid_spec=pltpu.PrefetchScalarGridSpec(
                num_scalar_prefetch=0,
                grid=(nb,),
                in_specs=[pl.BlockSpec(memory_space=pltpu.MemorySpace.VMEM)],
                out_specs=pl.BlockSpec((fb_rows, LANES), lambda i: (i, 0)),
                scratch_shapes=[pltpu.VMEM((1, 1), jnp.float32),
                                pltpu.VMEM((1, 1), jnp.float32)]),
            compiler_params=pltpu.CompilerParams(
                dimension_semantics=("arbitrary",),
                vmem_limit_bytes=vmem_limit),
            cost_estimate=pl.CostEstimate(
                flops=5 * n_elems, transcendentals=1,
                bytes_accessed=2 * slab_bytes),
        )(x2d)
    else:
        # ---- Two-pass path: 2 HBM reads + 1 HBM write ------------------------
        block_rows_r = 16384                               # 8 MiB f32 blocks
        block_rows_n = 16384 if vmem_limit >= 80 * _MIB else 8192
        core_split = num_cores if num_cores > 1 else 1

        c2d = (x2d[0:1, 0:1].astype(jnp.float32) if use_shift
               else jnp.zeros((1, 1), jnp.float32))

        num_blocks = pl.cdiv(total_rows, block_rows_r)
        bpc = pl.cdiv(num_blocks, core_split)
        if core_split * bpc == num_blocks:
            x_idx = lambda c, i: (c * bpc + i, 0)
        else:
            x_idx = lambda c, i: (jnp.minimum(c * bpc + i, num_blocks - 1), 0)

        part_sums, part_sqs = pl.pallas_call(
            functools.partial(
                _reduce_kernel, block_rows=block_rows_r, blocks_per_core=bpc,
                num_blocks=num_blocks, total_rows=total_rows,
                core_split=core_split),
            out_shape=(
                jax.ShapeDtypeStruct((core_split * 8, LANES), jnp.float32),
                jax.ShapeDtypeStruct((core_split * 8, LANES), jnp.float32)),
            grid_spec=pltpu.PrefetchScalarGridSpec(
                num_scalar_prefetch=0,
                grid=(core_split, bpc),
                in_specs=[
                    pl.BlockSpec(memory_space=pltpu.MemorySpace.VMEM),   # c
                    pl.BlockSpec((block_rows_r, LANES), x_idx),
                ],
                out_specs=(
                    pl.BlockSpec((8, LANES), lambda c, i: (c, 0)),
                    pl.BlockSpec((8, LANES), lambda c, i: (c, 0)),
                )),
            compiler_params=pltpu.CompilerParams(
                dimension_semantics=("parallel", "arbitrary"),
                vmem_limit_bytes=vmem_limit),
            cost_estimate=pl.CostEstimate(
                flops=4 * n_elems, transcendentals=0,
                bytes_accessed=slab_bytes),
        )(c2d, x2d)

        num_nblocks = pl.cdiv(total_rows, block_rows_n)
        out2d = pl.pallas_call(
            functools.partial(_normalize_kernel, n_valid=n_elems),
            out_shape=jax.ShapeDtypeStruct(x2d.shape, orig_dtype),
            grid_spec=pltpu.PrefetchScalarGridSpec(
                num_scalar_prefetch=0,
                grid=(num_nblocks,),
                in_specs=[
                    pl.BlockSpec(memory_space=pltpu.MemorySpace.VMEM),   # c
                    pl.BlockSpec(memory_space=pltpu.MemorySpace.VMEM),   # sums
                    pl.BlockSpec(memory_space=pltpu.MemorySpace.VMEM),   # sumsq
                    pl.BlockSpec((block_rows_n, LANES), lambda i: (i, 0)),
                ],
                out_specs=pl.BlockSpec((block_rows_n, LANES), lambda i: (i, 0)),
                scratch_shapes=[pltpu.VMEM((1, 1), jnp.float32),
                                pltpu.VMEM((1, 1), jnp.float32)]),
            compiler_params=pltpu.CompilerParams(
                dimension_semantics=("arbitrary",),
                vmem_limit_bytes=vmem_limit),
            cost_estimate=pl.CostEstimate(
                flops=2 * n_elems, transcendentals=1,
                bytes_accessed=2 * slab_bytes),
        )(c2d, part_sums, part_sqs, x2d)

    if rem:
        out = out2d.reshape(-1)[:n_elems].reshape(orig_shape)
    else:
        out = out2d.reshape(orig_shape)   # free view, no slice copy
    return out


def custom_normalize(image):
    """JAX/Pallas equivalent of CustomNormalize.forward."""
    if not isinstance(image, jax.Array):
        raise TypeError("Expected input to be a jax.Array")
    return _custom_normalize_impl(image)


if __name__ == "__main__":
    key = jax.random.PRNGKey(0)
    k1, k2, k3 = jax.random.split(key, 3)

    # Small NCHW input (fused path, single block).
    x = jax.random.normal(k1, (2, 4, 16, 16), dtype=jnp.float32) * 3.0 + 1.5
    out = jax.block_until_ready(custom_normalize(x))
    ref = (x - jnp.mean(x)) / jnp.std(x, ddof=1)
    assert out.shape == x.shape and out.dtype == x.dtype
    assert jnp.allclose(out, ref, atol=1e-5, rtol=1e-5)

    # Mid-size input (~4.6 MiB): now takes the fused 2x-HBM-traffic path with
    # pipelined output blocks instead of the 3x two-pass path.
    x_mid = jax.random.normal(k2, (2, 3, 448, 448), dtype=jnp.float32) * 2.0 + 0.5
    out_mid = jax.block_until_ready(custom_normalize(x_mid))
    ref_mid = (x_mid - jnp.mean(x_mid)) / jnp.std(x_mid, ddof=1)
    assert out_mid.shape == x_mid.shape and out_mid.dtype == x_mid.dtype
    assert jnp.allclose(out_mid, ref_mid, atol=1e-3, rtol=1e-3)

    # Large input (~64 MiB): exercises the two-pass path (8 MiB pass-1 blocks,
    # gated ragged-tail mask, in-kernel stats finalize in pass 2).
    x_big = jax.random.normal(k3, (1, 16, 1024, 1030), dtype=jnp.float32) * 2.0 + 0.5
    out_big = jax.block_until_ready(custom_normalize(x_big))
    ref_big = (x_big - jnp.mean(x_big)) / jnp.std(x_big, ddof=1)
    assert out_big.shape == x_big.shape and out_big.dtype == x_big.dtype
    assert jnp.allclose(out_big, ref_big, atol=2e-3, rtol=2e-3)

    print("KERNEL_OK")
</pallas_src>

<mosaic_0001>
module attributes {stable_mosaic.version = 11 : i64} {
  func.func @_fused_kernel(%arg0: i32, %arg1: memref<16x128xf32, #tpu.memory_space<vmem>>, %arg2: memref<16x128xf32, #tpu.memory_space<vmem>>, %arg3: memref<1x1xf32, #tpu.memory_space<vmem>>, %arg4: memref<1x1xf32, #tpu.memory_space<vmem>>) attributes {dimension_semantics = [#tpu.dimension_semantics<arbitrary>], iteration_bounds = array<i64: 1>, scalar_prefetch = 0 : i64, scratch_operands = 2 : i64, tpu.core_type = #tpu.core_type<tc>, window_params = [{pipeline_mode = #tpu.pipeline_mode<synchronous>, transform_indices = @transform_0, window_bounds = array<i64: 16, 128>}, {transform_indices = @transform_1, window_bounds = array<i64: 16, 128>}]} {
    %c0_i32 = arith.constant 0 : i32
    %0 = arith.cmpi eq, %arg0, %c0_i32 : i32
    %1 = arith.extui %0 : i1 to i32
    %c0_i32_0 = arith.constant 0 : i32
    %2 = arith.cmpi ne, %1, %c0_i32_0 : i32
    scf.if %2 {
      %c0_8 = arith.constant 0 : index
      %c0_9 = arith.constant 0 : index
      %11 = vector.load %arg1[%c0_8, %c0_9] : memref<16x128xf32, #tpu.memory_space<vmem>>, vector<1x1xf32>
      %c0_10 = arith.constant 0 : index
      %c0_11 = arith.constant 0 : index
      %12 = vector.load %arg1[%c0_10, %c0_11] : memref<16x128xf32, #tpu.memory_space<vmem>>, vector<16x128xf32>
      %13 = vector.broadcast %11 : vector<1x1xf32> to vector<16x128xf32>
      %14 = arith.subf %12, %13 : vector<16x128xf32>
      %15 = vector.shape_cast %14 : vector<16x128xf32> to vector<2x8x128xf32>
      %cst = arith.constant dense<0.000000e+00> : vector<8x128xf32>
      %16 = vector.multi_reduction <add>, %15, %cst [0] : vector<2x8x128xf32> to vector<8x128xf32>
      %17 = vector.shape_cast %16 : vector<8x128xf32> to vector<1x8x128xf32>
      %cst_12 = arith.constant dense<0.000000e+00> : vector<1xf32>
      %18 = vector.multi_reduction <add>, %17, %cst_12 [1, 2] : vector<1x8x128xf32> to vector<1xf32>
      %19 = vector.shape_cast %18 : vector<1xf32> to vector<1x1x1xf32>
      %20 = vector.extract %19[0, 0, 0] : f32 from vector<1x1x1xf32>
      %21 = vector.broadcast %20 : f32 to vector<1x1xf32>
      %22 = arith.mulf %15, %15 : vector<2x8x128xf32>
      %cst_13 = arith.constant dense<0.000000e+00> : vector<8x128xf32>
      %23 = vector.multi_reduction <add>, %22, %cst_13 [0] : vector<2x8x128xf32> to vector<8x128xf32>
      %24 = vector.shape_cast %23 : vector<8x128xf32> to vector<1x8x128xf32>
      %cst_14 = arith.constant dense<0.000000e+00> : vector<1xf32>
      %25 = vector.multi_reduction <add>, %24, %cst_14 [1, 2] : vector<1x8x128xf32> to vector<1xf32>
      %26 = vector.shape_cast %25 : vector<1xf32> to vector<1x1x1xf32>
      %27 = vector.extract %26[0, 0, 0] : f32 from vector<1x1x1xf32>
      %28 = vector.broadcast %27 : f32 to vector<1x1xf32>
      %cst_15 = arith.constant 2.048000e+03 : f32
      %29 = vector.broadcast %cst_15 : f32 to vector<1x1xf32>
      %30 = arith.divf %21, %29 : vector<1x1xf32>
      %31 = arith.addf %11, %30 : vector<1x1xf32>
      %32 = arith.mulf %21, %21 : vector<1x1xf32>
      %cst_16 = arith.constant 2.048000e+03 : f32
      %33 = vector.broadcast %cst_16 : f32 to vector<1x1xf32>
      %34 = arith.divf %32, %33 : vector<1x1xf32>
      %35 = arith.subf %28, %34 : vector<1x1xf32>
      %cst_17 = arith.constant 2.047000e+03 : f32
      %36 = vector.broadcast %cst_17 : f32 to vector<1x1xf32>
      %37 = arith.divf %35, %36 : vector<1x1xf32>
      %cst_18 = arith.constant 0.000000e+00 : f32
      %38 = vector.broadcast %cst_18 : f32 to vector<1x1xf32>
      %39 = arith.maximumf %37, %38 : vector<1x1xf32>
      %c0_19 = arith.constant 0 : index
      %c0_20 = arith.constant 0 : index
      %40 = vector.load %arg3[%c0_19, %c0_20] : memref<1x1xf32, #tpu.memory_space<vmem>>, vector<1x1xf32>
      tpu.vector_store %arg3[%c0_19, %c0_20], %31 {strides = array<i32>} : memref<1x1xf32, #tpu.memory_space<vmem>>, vector<1x1xf32>,
      %41 = math.rsqrt %39 : vector<1x1xf32>
      %c0_21 = arith.constant 0 : index
      %c0_22 = arith.constant 0 : index
      %42 = vector.load %arg4[%c0_21, %c0_22] : memref<1x1xf32, #tpu.memory_space<vmem>>, vector<1x1xf32>
      tpu.vector_store %arg4[%c0_21, %c0_22], %41 {strides = array<i32>} : memref<1x1xf32, #tpu.memory_space<vmem>>, vector<1x1xf32>,
    } else {
    }
    %c0 = arith.constant 0 : index
    %c0_1 = arith.constant 0 : index
    %3 = vector.load %arg3[%c0, %c0_1] : memref<1x1xf32, #tpu.memory_space<vmem>>, vector<1x1xf32>
    %c0_2 = arith.constant 0 : index
    %c0_3 = arith.constant 0 : index
    %4 = vector.load %arg4[%c0_2, %c0_3] : memref<1x1xf32, #tpu.memory_space<vmem>>, vector<1x1xf32>
    %c0_4 = arith.constant 0 : index
    %c0_5 = arith.constant 0 : index
    %5 = vector.load %arg1[%c0_4, %c0_5] : memref<16x128xf32, #tpu.memory_space<vmem>>, vector<16x128xf32>
    %6 = vector.broadcast %3 : vector<1x1xf32> to vector<16x128xf32>
    %7 = arith.subf %5, %6 : vector<16x128xf32>
    %8 = vector.broadcast %4 : vector<1x1xf32> to vector<16x128xf32>
    %9 = arith.mulf %7, %8 : vector<16x128xf32>
    %c0_6 = arith.constant 0 : index
    %c0_7 = arith.constant 0 : index
    %10 = vector.load %arg2[%c0_6, %c0_7] : memref<16x128xf32, #tpu.memory_space<vmem>>, vector<16x128xf32>
    tpu.vector_store %arg2[%c0_6, %c0_7], %9 {strides = array<i32>} : memref<16x128xf32, #tpu.memory_space<vmem>>, vector<16x128xf32>,
    return
  }
  func.func @transform_0(%arg0: i32) -> (i32, i32) {
    %c0_i32 = arith.constant 0 : i32
    %c0_i32_0 = arith.constant 0 : i32
    %c0_i32_1 = arith.constant 0 : i32
    return %c0_i32, %c0_i32_0 : i32, i32
  }
  func.func @transform_1(%arg0: i32) -> (i32, i32) {
    %c0_i32 = arith.constant 0 : i32
    %c0_i32_0 = arith.constant 0 : i32
    return %arg0, %c0_i32 : i32, i32
  }
}

</mosaic_0001>

<llo_original>
// kernel: _custom_normalize_impl.1
$region0: #{_custom_normalize_impl.1}
  #allocation0 [shape = 'u32[]', space=smem, size = 0x4, offset = 0x4, fixed_abs, tag = 'smem constant byte address 0x4 - core index']
  #allocation1 [shape = 'u32[72,128]{1,0:T(1,128)}', space=vmem, size = 0x9000, scoped, tag = 'internal scratch']
  #allocation2 [shape = 'f32[1,1]{1,0:T(1,128)}', space=vmem, size = 0x200, scoped, tag = 'scratch operand']
  #allocation3 [shape = 'f32[1,1]{1,0:T(1,128)}', space=vmem, size = 0x200, scoped, tag = 'scratch operand']
  %s0 = inlined_call_operand.vmem [shape: f32[16,128], index: 0, kind: input, shape index: {}]
  %s1 = inlined_call_operand.vmem [shape: f32[16,128], index: 1, kind: output, shape index: {}]
  %s2 = sld [smem:[#allocation0]]
  $region18: #{_custom_normalize_impl.1} parent=0
    _
  %s4 = ssub.s32 1, %s2
  %s5 = scalar_select 0, %s4, %s2
  // Predicated region
  $region2: #{_custom_normalize_impl.1} parent=0 // pred_check
    _
  $region3: #{_custom_normalize_impl.1} parent=0 // pred_check_branch
    %7 = sbr.rel (0) target = $region5
  $region4: #{_custom_normalize_impl.1} parent=0 // pred_region
    _
  $region5: #{_custom_normalize_impl.1} parent=0 // pred_fallthru
    _
  %p8 = scmp.eq.s32.totalorder 0, 0
  // Predicated region
  $region6: #{_custom_normalize_impl.1} parent=0 // pred_check
    %p9 = pneg %p8
  $region7: #{_custom_normalize_impl.1} parent=0 // pred_check_branch
    %11 = sbr.rel (%p9) target = $region9
  $region8: #{_custom_normalize_impl.1} parent=0 // pred_region
    %v12 = vld [vmem:[%s0] sm:$0x1]
    %v13 = vld [vmem:[%s0] sm:$0xff]
    %v14 = vld [vmem:[%s0 + $0x8] sm:$0xff]
    %s16 = vtos %v12
    %v17 = vstv %s16
    %v19 = vsub.f32 %v13, %v17
    %v20 = vsub.f32 %v14, %v17
    %v21 = vadd.f32 %v19, %v20
    %22 = vadd.xlane.f32.xlu0 %v21
    %v23 = vpop.xlane.xlu0 %22
    %v24 = vrot.slane %v23, 4
    %v25 = vadd.f32 %v23, %v24
    %v26 = vrot.slane %v25, 2
    %v27 = vadd.f32 %v25, %v26
    %v28 = vrot.slane %v27, 1
    %v29 = vadd.f32 %v27, %v28
    %s30 = vtos %v29
    %v31 = vstv %s30
    %v32 = vmul.f32 %v19, %v19
    %v33 = vmul.f32 %v20, %v20
    %v34 = vadd.f32 %v32, %v33
    %35 = vadd.xlane.f32.xlu0 %v34
    %v36 = vpop.xlane.xlu0 %35
    %v37 = vrot.slane %v36, 4
    %v38 = vadd.f32 %v36, %v37
    %v39 = vrot.slane %v38, 2
    %v40 = vadd.f32 %v38, %v39
    %v41 = vrot.slane %v40, 1
    %v42 = vadd.f32 %v40, %v41
    %s43 = vtos %v42
    %v44 = vstv %s43
    %v45 = vrcp.pop 2048.0
    %v46 = vmul.f32 2048.0, %v45
    %v47 = vsub.f32 1.0, %v46
    %v48 = vmul.f32 %v45, %v47
    %v49 = vadd.f32 %v45, %v48
    %vm50 = vweird.f32 %v45
    %v51 = vsel %vm50, %v45, %v49
    %v52 = vmul.f32 %v31, %v51
    %v53 = vadd.f32 %v12, %v52
    %v54 = vmul.f32 %v31, %v31
    %v55 = vmul.f32 %v54, %v51
    %v56 = vsub.f32 %v44, %v55
    %v57 = vrcp.pop 2047.0
    %v58 = vmul.f32 2047.0, %v57
    %v59 = vsub.f32 1.0, %v58
    %v60 = vmul.f32 %v57, %v59
    %v61 = vadd.f32 %v57, %v60
    %vm62 = vweird.f32 %v57
    %v63 = vsel %vm62, %v57, %v61
    %v64 = vmul.f32 %v56, %v63
    %v65 = vmax.f32 %v64, 0.0
    %vm66 = vcmask 0
    %67 = vst.msk [vmem:[#allocation2] sm:$0x1] %vm66, %v53
    %v68 = vrsqrt.pop %v65
    %v69 = vmul.f32 %v68, %v65
    %v70 = vmul.f32 %v69, %v68
    %v71 = vmul.f32 0.5, %v70
    %v72 = vsub.f32 1.5, %v71
    %v73 = vmul.f32 %v68, %v72
    %vm74 = vweird.f32 %v65
    %vm75 = vweird.f32 %v68
    %vm76 = vmor %vm74, %vm75
    %v77 = vsel %vm76, %v68, %v73
    %78 = vst.msk [vmem:[#allocation3] sm:$0x1] %vm66, %v77
  $region9: #{_custom_normalize_impl.1} parent=0 // pred_fallthru
    _
  %v79 = vld [vmem:[#allocation2] sm:$0x1]
  %v80 = vld [vmem:[#allocation3] sm:$0x1]
  %v81 = vld [vmem:[%s0] sm:$0xff]
  %v82 = vld [vmem:[%s0 + $0x8] sm:$0xff]
  %v84 = vperm.slane %v79, 0
  %85 = vset.pattern.permute.xlu0 0
  %86 = vperm.xlu0 %85, %v84
  %v87 = vpop.permute.xlu0 %86
  %v89 = vsub.f32 %v81, %v87
  %v90 = vsub.f32 %v82, %v87
  %v92 = vperm.slane %v80, 0
  %93 = vset.pattern.permute.xlu0 0
  %94 = vperm.xlu0 %93, %v92
  %v95 = vpop.permute.xlu0 %94
  %v97 = vmul.f32 %v89, %v95
  %v98 = vmul.f32 %v90, %v95
  %99 = vst [vmem:[%s1] sm:$0xff] %v97
  %100 = vst [vmem:[%s1 + $0x8] sm:$0xff] %v98
  // Predicated region
  $region10: #{_custom_normalize_impl.1} parent=0 // pred_check
    _
  $region11: #{_custom_normalize_impl.1} parent=0 // pred_check_branch
    %102 = sbr.rel (0) target = $region13
  $region12: #{_custom_normalize_impl.1} parent=0 // pred_region
    _
  $region13: #{_custom_normalize_impl.1} parent=0 // pred_fallthru
    _
  // Predicated region
  $region14: #{_custom_normalize_impl.1} parent=0 // pred_check
    _
  $region15: #{_custom_normalize_impl.1} parent=0 // pred_check_branch
    %104 = sbr.rel (0) target = $region17
  $region16: #{_custom_normalize_impl.1} parent=0 // pred_region
    _
  $region17: #{_custom_normalize_impl.1} parent=0 // pred_fallthru
    _

</llo_original>
